<compile_context>
chip_gen: v7x
topology: tpu7x:2x2x1
jax: 0.10.0
libtpu: 0.0.40
codegen_flags: <defaults>
</compile_context>

<pallas_src>
import functools

import numpy as np
import jax
import jax.numpy as jnp
from jax.experimental import pallas as pl
from jax.experimental.pallas import tpu as pltpu


@functools.lru_cache(maxsize=None)
def _bilinear_matrix(n_in: int, n_out: int) -> np.ndarray:
    """Exact 1D operator of F.interpolate(mode='bilinear', align_corners=False)."""
    m = np.zeros((n_out, n_in), np.float32)
    if n_out == n_in:
        np.fill_diagonal(m, 1.0)
        return m
    scale = n_in / n_out
    for i in range(n_out):
        src = max((i + 0.5) * scale - 0.5, 0.0)   # PyTorch clamps negative coords
        i0 = min(int(np.floor(src)), n_in - 1)
        i1 = min(i0 + 1, n_in - 1)
        frac = src - i0
        m[i, i0] += 1.0 - frac
        m[i, i1] += frac
    return m


@functools.lru_cache(maxsize=None)
def _axis_operator(n: int, smooth: bool) -> np.ndarray:
    """(n//2, n) matrix = [bilinear /2 resize] @ [1D blur (1,2,1)/4] @ [replicate pad 1]."""
    assert n >= 2, "DownSample needs spatial dims >= 2"
    down = _bilinear_matrix(n, n // 2)            # exact 2x2 avg-pool for even n
    if not smooth:
        return down
    # replication pad by 1: (n+2, n)
    pad = np.zeros((n + 2, n), np.float32)
    pad[0, 0] = 1.0
    pad[n + 1, n - 1] = 1.0
    pad[np.arange(1, n + 1), np.arange(n)] = 1.0
    # 1D blur (valid conv with [1,2,1]/4): (n, n+2)
    blur = np.zeros((n, n + 2), np.float32)
    idx = np.arange(n)
    blur[idx, idx] = 0.25
    blur[idx, idx + 1] = 0.5
    blur[idx, idx + 2] = 0.25
    return down @ blur @ pad


@functools.lru_cache(maxsize=None)
def _blockdiag_row_operator(n: int, tile: int, smooth: bool) -> np.ndarray:
    """I_tile (x) M_h : (tile*(n//2), tile*n) block-diagonal H-axis operator."""
    mh = _axis_operator(n, smooth)
    return np.kron(np.eye(tile, dtype=np.float32), mh)


def _pick_bc_tile(bc: int, h: int, w: int, ho: int, wo: int, itemsize: int,
                  budget_bytes: int = 20 << 20) -> int:
    """Largest divisor of bc whose double-buffered working set fits the budget."""
    best = 1
    for t in range(1, min(bc, 32) + 1):
        if bc % t:
            continue
        x_b = t * h * w * itemsize
        o_b = t * ho * wo * itemsize
        l_b = (t * ho) * (t * h) * itemsize      # block-diagonal H operator
        m_b = w * wo * itemsize                  # W operator
        inter = ((t * h) * wo + (t * ho) * wo) * 4   # f32 intermediates
        if 2 * (x_b + o_b + l_b + m_b) + inter <= budget_bytes:
            best = t
    # v7x has 2 TensorCores: prefer >= 2 grid steps when that still leaves a
    # reasonably large batched matmul (>= 256 rows).  Near-zero effect on
    # v5e/v6e (single TC).
    if best == bc and bc % 2 == 0 and (bc // 2) * h >= 256:
        best = bc // 2
    return best


def _downsample_kernel(x_ref, l_ref, mwT_ref, o_ref):
    # x_ref:  (t, H, W)          l_ref:  (t*Ho, t*H)
    # mwT_ref:(W, Wo)            o_ref:  (t, Ho, Wo)
    t, H, W = x_ref.shape
    _, Ho, Wo = o_ref.shape

    x2d = x_ref[...].reshape(t * H, W)                # leading-dim merge only
    # W pass: one large matmul, M = t*H rows.
    y = jnp.dot(x2d, mwT_ref[...], preferred_element_type=jnp.float32)     # (t*H, Wo)
    y = y.astype(x_ref.dtype)                         # keep fast MXU path for pass 2
    # H pass: block-diagonal (I_t (x) M_h) keeps it a single matmul, K = t*H.
    z = jnp.dot(l_ref[...], y, preferred_element_type=jnp.float32)         # (t*Ho, Wo)
    o_ref[...] = z.reshape(t, Ho, Wo).astype(o_ref.dtype)


def downsample(x: jax.Array, *, smooth: bool = True) -> jax.Array:
    """Pallas implementation of DownSample.forward for NCHW input."""
    B, C, H, W = x.shape
    assert H >= 2 and W >= 2, "DownSample needs spatial dims >= 2"
    if not jnp.issubdtype(x.dtype, jnp.floating):
        x = x.astype(jnp.float32)
    Ho, Wo = H // 2, W // 2
    BC = B * C

    op_dtype = x.dtype
    itemsize = jnp.dtype(op_dtype).itemsize
    t = _pick_bc_tile(BC, H, W, Ho, Wo, itemsize)
    num_steps = BC // t

    # Operators in the compute dtype (bf16 inputs -> bf16 operands on the MXU).
    mwT = jnp.asarray(_axis_operator(W, smooth).T, dtype=op_dtype)            # (W, Wo)
    lop = jnp.asarray(_blockdiag_row_operator(H, t, smooth), dtype=op_dtype)  # (t*Ho, t*H)

    xf = x.reshape(BC, H, W)

    flops = int(2 * BC * H * W * Wo + 2 * num_steps * (t * Ho) * (t * H) * Wo)
    bytes_accessed = int(
        (BC * H * W + BC * Ho * Wo) * itemsize
        + ((t * Ho) * (t * H) + W * Wo) * itemsize
    )

    # NOTE: odd H/W are supported via the exact bilinear operator above; the
    # in-kernel leading-dim merges then take a (cheap) relayout path.
    out = pl.pallas_call(
        _downsample_kernel,
        out_shape=jax.ShapeDtypeStruct((BC, Ho, Wo), x.dtype),
        grid=(num_steps,),
        in_specs=[
            pl.BlockSpec((t, H, W), lambda i: (i, 0, 0)),
            pl.BlockSpec((t * Ho, t * H), lambda i: (0, 0)),  # grid-invariant: DMA'd once
            pl.BlockSpec((W, Wo), lambda i: (0, 0)),          # grid-invariant: DMA'd once
        ],
        out_specs=pl.BlockSpec((t, Ho, Wo), lambda i: (i, 0, 0)),
        compiler_params=pltpu.CompilerParams(
            dimension_semantics=("parallel",),
            vmem_limit_bytes=32 * 1024 * 1024,
        ),
        cost_estimate=pl.CostEstimate(
            flops=flops, transcendentals=0, bytes_accessed=bytes_accessed),
    )(xf, lop, mwT)

    return out.reshape(B, C, Ho, Wo)


def _reference_forward(x_np: np.ndarray, smooth: bool = True) -> np.ndarray:
    """Pure numpy reference: [replication pad -> 3x3 blur] -> 2x2 average (even dims)."""
    B, C, H, W = x_np.shape
    if smooth:
        k = np.array([[1, 2, 1], [2, 4, 2], [1, 2, 1]], np.float32) / 16.0
        xp = np.pad(x_np, ((0, 0), (0, 0), (1, 1), (1, 1)), mode="edge")
        sm = np.zeros_like(x_np)
        for dy in range(3):
            for dx in range(3):
                sm += k[dy, dx] * xp[:, :, dy:dy + H, dx:dx + W]
    else:
        sm = x_np
    return 0.25 * (
        sm[:, :, 0::2, 0::2] + sm[:, :, 0::2, 1::2]
        + sm[:, :, 1::2, 0::2] + sm[:, :, 1::2, 1::2]
    )


if __name__ == "__main__":
    key = jax.random.PRNGKey(0)
    B, C, H, W = 2, 4, 16, 16
    x = jax.random.normal(key, (B, C, H, W), dtype=jnp.float32)

    y = jax.block_until_ready(jax.jit(functools.partial(downsample, smooth=True))(x))
    assert y.shape == (B, C, H // 2, W // 2), y.shape
    np.testing.assert_allclose(
        np.asarray(y), _reference_forward(np.asarray(x), smooth=True),
        rtol=1e-5, atol=1e-5)

    y_ns = jax.block_until_ready(jax.jit(functools.partial(downsample, smooth=False))(x))
    np.testing.assert_allclose(
        np.asarray(y_ns), _reference_forward(np.asarray(x), smooth=False),
        rtol=1e-5, atol=1e-5)

    print("KERNEL_OK")
</pallas_src>

<mosaic_0001>
module attributes {stable_mosaic.version = 11 : i64} {
  func.func @_downsample_kernel(%arg0: i32, %arg1: memref<8x16x16xf32, #tpu.memory_space<vmem>>, %arg2: memref<64x128xf32, #tpu.memory_space<vmem>>, %arg3: memref<16x8xf32, #tpu.memory_space<vmem>>, %arg4: memref<8x8x8xf32, #tpu.memory_space<vmem>>) attributes {dimension_semantics = [#tpu.dimension_semantics<parallel>], iteration_bounds = array<i64: 1>, scalar_prefetch = 0 : i64, scratch_operands = 0 : i64, tpu.core_type = #tpu.core_type<tc>, window_params = [{transform_indices = @transform_0, window_bounds = array<i64: 8, 16, 16>}, {pipeline_mode = #tpu.pipeline_mode<synchronous>, transform_indices = @transform_1, window_bounds = array<i64: 64, 128>}, {pipeline_mode = #tpu.pipeline_mode<synchronous>, transform_indices = @transform_2, window_bounds = array<i64: 16, 8>}, {transform_indices = @transform_3, window_bounds = array<i64: 8, 8, 8>}]} {
    %c0 = arith.constant 0 : index
    %c0_0 = arith.constant 0 : index
    %c0_1 = arith.constant 0 : index
    %0 = vector.load %arg1[%c0, %c0_0, %c0_1] : memref<8x16x16xf32, #tpu.memory_space<vmem>>, vector<8x16x16xf32>
    %1 = vector.shape_cast %0 : vector<8x16x16xf32> to vector<128x16xf32>
    %c0_2 = arith.constant 0 : index
    %c0_3 = arith.constant 0 : index
    %2 = vector.load %arg3[%c0_2, %c0_3] : memref<16x8xf32, #tpu.memory_space<vmem>>, vector<16x8xf32>
    %cst = arith.constant dense<0.000000e+00> : vector<128x8xf32>
    %3 = tpu.matmul %1, %2, %cst {dimension_numbers = #tpu.dot_dimension_numbers<[1], [0], [0], [1], [0, 0, 1, 1], [], []>} : vector<128x16xf32>, vector<16x8xf32>, vector<128x8xf32> -> vector<128x8xf32>
    %c0_4 = arith.constant 0 : index
    %c0_5 = arith.constant 0 : index
    %4 = vector.load %arg2[%c0_4, %c0_5] : memref<64x128xf32, #tpu.memory_space<vmem>>, vector<64x128xf32>
    %cst_6 = arith.constant dense<0.000000e+00> : vector<64x8xf32>
    %5 = tpu.matmul %4, %3, %cst_6 {dimension_numbers = #tpu.dot_dimension_numbers<[1], [0], [0], [1], [0, 0, 1, 1], [], []>} : vector<64x128xf32>, vector<128x8xf32>, vector<64x8xf32> -> vector<64x8xf32>
    %6 = vector.shape_cast %5 : vector<64x8xf32> to vector<8x8x8xf32>
    %c0_7 = arith.constant 0 : index
    %c0_8 = arith.constant 0 : index
    %c0_9 = arith.constant 0 : index
    %7 = vector.load %arg4[%c0_7, %c0_8, %c0_9] : memref<8x8x8xf32, #tpu.memory_space<vmem>>, vector<8x8x8xf32>
    tpu.vector_store %arg4[%c0_7, %c0_8, %c0_9], %6 {strides = array<i32>} : memref<8x8x8xf32, #tpu.memory_space<vmem>>, vector<8x8x8xf32>,
    return
  }
  func.func @transform_0(%arg0: i32) -> (i32, i32, i32) {
    %c0_i32 = arith.constant 0 : i32
    %c0_i32_0 = arith.constant 0 : i32
    %c0_i32_1 = arith.constant 0 : i32
    return %arg0, %c0_i32, %c0_i32_0 : i32, i32, i32
  }
  func.func @transform_1(%arg0: i32) -> (i32, i32) {
    %c0_i32 = arith.constant 0 : i32
    %c0_i32_0 = arith.constant 0 : i32
    %c0_i32_1 = arith.constant 0 : i32
    return %c0_i32, %c0_i32_0 : i32, i32
  }
  func.func @transform_2(%arg0: i32) -> (i32, i32) {
    %c0_i32 = arith.constant 0 : i32
    %c0_i32_0 = arith.constant 0 : i32
    %c0_i32_1 = arith.constant 0 : i32
    return %c0_i32, %c0_i32_0 : i32, i32
  }
  func.func @transform_3(%arg0: i32) -> (i32, i32, i32) {
    %c0_i32 = arith.constant 0 : i32
    %c0_i32_0 = arith.constant 0 : i32
    %c0_i32_1 = arith.constant 0 : i32
    return %arg0, %c0_i32, %c0_i32_0 : i32, i32, i32
  }
}

</mosaic_0001>

<llo_original>
// kernel: downsample.1
$region0: #{downsample.1}
  #allocation0 [shape = 'u32[]', space=smem, size = 0x4, offset = 0x4, fixed_abs, tag = 'smem constant byte address 0x4 - core index']
  #allocation1 [shape = 'u32[144,128]{1,0:T(1,128)}', space=vmem, size = 0x12000, scoped, tag = 'internal scratch']
  %s0 = inlined_call_operand.hbm [shape: f32[8,16,16], index: 0, kind: input, shape index: {}]
  %s1 = inlined_call_operand.hbm [shape: f32[64,128], index: 1, kind: input, shape index: {}]
  %s2 = inlined_call_operand.hbm [shape: f32[16,8], index: 2, kind: input, shape index: {}]
  %s3 = inlined_call_operand.hbm [shape: f32[8,8,8], index: 3, kind: output, shape index: {}]
  %s4 = sld [smem:[#allocation0]]
  $region34: #{downsample.1} parent=0
    _
  %s6 = ssub.s32 1, %s4
  %s7 = scalar_select 0, %s6, %s4
  $region1: #{downsample.1} parent=0
    #allocation2 [shape = 'u8[65536]{0}', space=vmem, size = 0x10000, scoped, tag = 'input window, operand 0, single buffered']
    #allocation3 [shape = 's32[1]{0}', space=sflag, size = 0x4, scoped, tag = 'scoped memory for downsample.1']
    #allocation4 [shape = 's32[1]{0}', space=sflag, size = 0x4, scoped, tag = 'scoped memory for downsample.1']
    #allocation5 [shape = 'u8[32768]{0}', space=vmem, size = 0x8000, scoped, tag = 'input window, operand 1, single buffered']
    #allocation6 [shape = 's32[1]{0}', space=sflag, size = 0x4, scoped, tag = 'scoped memory for downsample.1']
    #allocation7 [shape = 'u8[8192]{0}', space=vmem, size = 0x2000, scoped, tag = 'input window, operand 2, single buffered']
    #allocation8 [shape = 'u8[32768]{0}', space=vmem, size = 0x8000, scoped, tag = 'output window, operand 0, single buffered']
    %8 = vsyncpa [#allocation3], 0
    %9 = vsyncpa [#allocation6], 0
    %10 = vsyncpa [#allocation4], 0
    // Predicated region
    $region2: #{downsample.1} parent=1 // pred_check
      _
    $region3: #{downsample.1} parent=1 // pred_check_branch
      %12 = sbr.rel (0) target = $region5
    $region4: #{downsample.1} parent=1 // pred_region
      %s14 = ssub.s32 2048, 2048
      %15 = vsyncadd [#allocation3], %s14
      %s16 = sshll.u32 [#allocation2], 4
      %s17 = int_to_ptr.vmem [resolvable:$true] %s16
      %22 = dma.hbm_to_vmem [thread:$0]  %s0, 2048, %s17, [#allocation3], 128, 128, 8
    $region5: #{downsample.1} parent=1 // pred_fallthru
      _
    // Predicated region
    $region6: #{downsample.1} parent=1 // pred_check
      _
    $region7: #{downsample.1} parent=1 // pred_check_branch
      %24 = sbr.rel (0) target = $region9
    $region8: #{downsample.1} parent=1 // pred_region
      %s26 = ssub.s32 1024, 1024
      %27 = vsyncadd [#allocation6], %s26
      %s28 = sshll.u32 [#allocation5], 4
      %s29 = int_to_ptr.vmem [resolvable:$true] %s28
      %34 = dma.hbm_to_vmem [thread:$0]  %s1, 1024, %s29, [#allocation6], 128, 128, 8
    $region9: #{downsample.1} parent=1 // pred_fallthru
      _
    // Predicated region
    $region10: #{downsample.1} parent=1 // pred_check
      _
    $region11: #{downsample.1} parent=1 // pred_check_branch
      %36 = sbr.rel (0) target = $region13
    $region12: #{downsample.1} parent=1 // pred_region
      %s38 = ssub.s32 256, 256
      %39 = vsyncadd [#allocation6], %s38
      %s40 = sshll.u32 [#allocation7], 4
      %s41 = int_to_ptr.vmem [resolvable:$true] %s40
      %46 = dma.hbm_to_vmem [thread:$0]  %s2, 256, %s41, [#allocation6], 128, 128, 8
    $region13: #{downsample.1} parent=1 // pred_fallthru
      _
    // Predicated region
    $region14: #{downsample.1} parent=1 // pred_check
      _
    $region15: #{downsample.1} parent=1 // pred_check_branch
      %48 = sbr.rel (0) target = $region17
    $region16: #{downsample.1} parent=1 // pred_region
      %49 = dma.done [#allocation3], 2048
    $region17: #{downsample.1} parent=1 // pred_fallthru
      _
    // Predicated region
    $region18: #{downsample.1} parent=1 // pred_check
      _
    $region19: #{downsample.1} parent=1 // pred_check_branch
      %51 = sbr.rel (0) target = $region21
    $region20: #{downsample.1} parent=1 // pred_region
      %52 = dma.done [#allocation6], 1024
    $region21: #{downsample.1} parent=1 // pred_fallthru
      _
    // Predicated region
    $region22: #{downsample.1} parent=1 // pred_check
      _
    $region23: #{downsample.1} parent=1 // pred_check_branch
      %54 = sbr.rel (0) target = $region25
    $region24: #{downsample.1} parent=1 // pred_region
      %55 = dma.done [#allocation6], 256
    $region25: #{downsample.1} parent=1 // pred_fallthru
      _
    %v56 = vld [vmem:[#allocation2] sm:$0xff]
    %v57 = vld [vmem:[#allocation2 + $0x8] sm:$0xff]
    %v58 = vld [vmem:[#allocation2 + $0x10] sm:$0xff]
    %v59 = vld [vmem:[#allocation2 + $0x18] sm:$0xff]
    %v60 = vld [vmem:[#allocation2 + $0x20] sm:$0xff]
    %v61 = vld [vmem:[#allocation2 + $0x28] sm:$0xff]
    %v62 = vld [vmem:[#allocation2 + $0x30] sm:$0xff]
    %v63 = vld [vmem:[#allocation2 + $0x38] sm:$0xff]
    %v64 = vld [vmem:[#allocation2 + $0x40] sm:$0xff]
    %v65 = vld [vmem:[#allocation2 + $0x48] sm:$0xff]
    %v66 = vld [vmem:[#allocation2 + $0x50] sm:$0xff]
    %v67 = vld [vmem:[#allocation2 + $0x58] sm:$0xff]
    %v68 = vld [vmem:[#allocation2 + $0x60] sm:$0xff]
    %v69 = vld [vmem:[#allocation2 + $0x68] sm:$0xff]
    %v70 = vld [vmem:[#allocation2 + $0x70] sm:$0xff]
    %v71 = vld [vmem:[#allocation2 + $0x78] sm:$0xff]
    %v72 = vld [vmem:[#allocation7] sm:$0xff]
    %v73 = vld [vmem:[#allocation7 + $0x8] sm:$0xff]
    %vm74 = vcmask 130048
    %v76 = vsel %vm74, %v56, 0
    %v79 = vsel %vm74, %v57, 0
    %v82 = vsel %vm74, %v58, 0
    %v85 = vsel %vm74, %v59, 0
    %v88 = vsel %vm74, %v60, 0
    %v91 = vsel %vm74, %v61, 0
    %v94 = vsel %vm74, %v62, 0
    %v97 = vsel %vm74, %v63, 0
    %v100 = vsel %vm74, %v64, 0
    %v103 = vsel %vm74, %v65, 0
    %v106 = vsel %vm74, %v66, 0
    %v109 = vsel %vm74, %v67, 0
    %v112 = vsel %vm74, %v68, 0
    %v115 = vsel %vm74, %v69, 0
    %v118 = vsel %vm74, %v70, 0
    %v121 = vsel %vm74, %v71, 0
    %123 = vmatprep.subr.mxu0 0.0
    %124 = vmatpush1.msra.mxu0 %v72
    %125 = vmatprep.subr.mxu0 0.0
    %126 = vmatpush1.msra.mxu0 %v73
    %127 = vmatprep.subr.mxu0 0.0
    %128 = vmatpush1.msra.mxu0 0.0
    %129 = vmatprep.subr.mxu0 0.0
    %130 = vmatpush1.msra.mxu0 0.0
    %131 = vmatprep.subr.mxu0 0.0
    %132 = vmatpush1.msra.mxu0 0.0
    %133 = vmatprep.subr.mxu0 0.0
    %134 = vmatpush1.msra.mxu0 0.0
    %135 = vmatprep.subr.mxu0 0.0
    %136 = vmatpush1.msra.mxu0 0.0
    %137 = vmatprep.subr.mxu0 0.0
    %138 = vmatpush1.msra.mxu0 0.0
    %139 = vmatprep.subr.mxu0 0.0
    %140 = vmatpush1.msra.mxu0 0.0
    %141 = vmatprep.subr.mxu0 0.0
    %142 = vmatpush1.msra.mxu0 0.0
    %143 = vmatprep.subr.mxu0 0.0
    %144 = vmatpush1.msra.mxu0 0.0
    %145 = vmatprep.subr.mxu0 0.0
    %146 = vmatpush1.msra.mxu0 0.0
    %147 = vmatprep.subr.mxu0 0.0
    %148 = vmatpush1.msra.mxu0 0.0
    %149 = vmatprep.subr.mxu0 0.0
    %150 = vmatpush1.msra.mxu0 0.0
    %151 = vmatprep.subr.mxu0 0.0
    %152 = vmatpush1.msra.mxu0 0.0
    %153 = vmatprep.subr.mxu0 0.0
    %154 = vmatpush1.msra.mxu0 0.0
    %155 = vmatprep.subr.mxu0 0.0
    %156 = vmatpush1.msra.mxu0 0.0
    %157 = vmatprep.subr.mxu0 0.0
    %158 = vmatpush1.msra.mxu0 0.0
    %159 = vmatprep.subr.mxu0 0.0
    %160 = vmatpush1.msra.mxu0 0.0
    %161 = vmatprep.subr.mxu0 0.0
    %162 = vmatpush1.msra.mxu0 0.0
    %163 = vmatprep.subr.mxu0 0.0
    %164 = vmatpush1.msra.mxu0 0.0
    %165 = vmatprep.subr.mxu0 0.0
    %166 = vmatpush1.msra.mxu0 0.0
    %167 = vmatprep.subr.mxu0 0.0
    %168 = vmatpush1.msra.mxu0 0.0
    %169 = vmatprep.subr.mxu0 0.0
    %170 = vmatpush1.msra.mxu0 0.0
    %171 = vmatprep.subr.mxu0 0.0
    %172 = vmatpush1.msra.mxu0 0.0
    %173 = vmatprep.subr.mxu0 0.0
    %174 = vmatpush1.msra.mxu0 0.0
    %175 = vmatprep.subr.mxu0 0.0
    %176 = vmatpush1.msra.mxu0 0.0
    %177 = vmatprep.subr.mxu0 0.0
    %178 = vmatpush1.msra.mxu0 0.0
    %179 = vmatprep.subr.mxu0 0.0
    %180 = vmatpush1.msra.mxu0 0.0
    %181 = vmatprep.subr.mxu0 0.0
    %182 = vmatpush1.msra.mxu0 0.0
    %183 = vmatprep.subr.mxu0 0.0
    %184 = vmatpush1.msra.mxu0 0.0
    %185 = vmatprep.subr.mxu0 0.0
    %186 = vmatpush1.msra.mxu0 0.0
    %187 = vmatprep.mubr.f32.mxu0 0.0
    %188 = vmatmul.mubr.f32.gmra.mrb[0].mxu0 %v76
    %v189 = vpop.f32.mrb[0].mxu0
    %v190 = vadd.f32 0.0, %v189
    %v191 = vpop.f32.mrb[0].mxu0
    %192 = vmatprep.mubr.f32.mxu0 0.0
    %193 = vmatmul.mubr.f32.gmra.mrb[0].mxu0 %v79
    %v194 = vpop.f32.mrb[0].mxu0
    %v195 = vadd.f32 0.0, %v194
    %v196 = vpop.f32.mrb[0].mxu0
    %197 = vmatprep.mubr.f32.mxu0 0.0
    %198 = vmatmul.mubr.f32.gmra.mrb[0].mxu0 %v82
    %v199 = vpop.f32.mrb[0].mxu0
    %v200 = vadd.f32 0.0, %v199
    %v201 = vpop.f32.mrb[0].mxu0
    %202 = vmatprep.mubr.f32.mxu0 0.0
    %203 = vmatmul.mubr.f32.gmra.mrb[0].mxu0 %v85
    %v204 = vpop.f32.mrb[0].mxu0
    %v205 = vadd.f32 0.0, %v204
    %v206 = vpop.f32.mrb[0].mxu0
    %207 = vmatprep.mubr.f32.mxu0 0.0
    %208 = vmatmul.mubr.f32.gmra.mrb[0].mxu0 %v88
    %v209 = vpop.f32.mrb[0].mxu0
    %v210 = vadd.f32 0.0, %v209
    %v211 = vpop.f32.mrb[0].mxu0
    %212 = vmatprep.mubr.f32.mxu0 0.0
    %213 = vmatmul.mubr.f32.gmra.mrb[0].mxu0 %v91
    %v214 = vpop.f32.mrb[0].mxu0
    %v215 = vadd.f32 0.0, %v214
    %v216 = vpop.f32.mrb[0].mxu0
    %217 = vmatprep.mubr.f32.mxu0 0.0
    %218 = vmatmul.mubr.f32.gmra.mrb[0].mxu0 %v94
    %v219 = vpop.f32.mrb[0].mxu0
    %v220 = vadd.f32 0.0, %v219
    %v221 = vpop.f32.mrb[0].mxu0
    %222 = vmatprep.mubr.f32.mxu0 0.0
    %223 = vmatmul.mubr.f32.gmra.mrb[0].mxu0 %v97
    %v224 = vpop.f32.mrb[0].mxu0
    %v225 = vadd.f32 0.0, %v224
    %v226 = vpop.f32.mrb[0].mxu0
    %227 = vmatprep.mubr.f32.mxu0 0.0
    %228 = vmatmul.mubr.f32.gmra.mrb[0].mxu0 %v100
    %v229 = vpop.f32.mrb[0].mxu0
    %v230 = vadd.f32 0.0, %v229
    %v231 = vpop.f32.mrb[0].mxu0
    %232 = vmatprep.mubr.f32.mxu0 0.0
    %233 = vmatmul.mubr.f32.gmra.mrb[0].mxu0 %v103
    %v234 = vpop.f32.mrb[0].mxu0
    %v235 = vadd.f32 0.0, %v234
    %v236 = vpop.f32.mrb[0].mxu0
    %237 = vmatprep.mubr.f32.mxu0 0.0
    %238 = vmatmul.mubr.f32.gmra.mrb[0].mxu0 %v106
    %v239 = vpop.f32.mrb[0].mxu0
    %v240 = vadd.f32 0.0, %v239
    %v241 = vpop.f32.mrb[0].mxu0
    %242 = vmatprep.mubr.f32.mxu0 0.0
    %243 = vmatmul.mubr.f32.gmra.mrb[0].mxu0 %v109
    %v244 = vpop.f32.mrb[0].mxu0
    %v245 = vadd.f32 0.0, %v244
    %v246 = vpop.f32.mrb[0].mxu0
    %247 = vmatprep.mubr.f32.mxu0 0.0
    %248 = vmatmul.mubr.f32.gmra.mrb[0].mxu0 %v112
    %v249 = vpop.f32.mrb[0].mxu0
    %v250 = vadd.f32 0.0, %v249
    %v251 = vpop.f32.mrb[0].mxu0
    %252 = vmatprep.mubr.f32.mxu0 0.0
    %253 = vmatmul.mubr.f32.gmra.mrb[0].mxu0 %v115
    %v254 = vpop.f32.mrb[0].mxu0
    %v255 = vadd.f32 0.0, %v254
    %v256 = vpop.f32.mrb[0].mxu0
    %257 = vmatprep.mubr.f32.mxu0 0.0
    %258 = vmatmul.mubr.f32.gmra.mrb[0].mxu0 %v118
    %v259 = vpop.f32.mrb[0].mxu0
    %v260 = vadd.f32 0.0, %v259
    %v261 = vpop.f32.mrb[0].mxu0
    %262 = vmatprep.mubr.f32.mxu0 0.0
    %263 = vmatmul.mubr.f32.gmra.mrb[0].mxu0 %v121
    %v264 = vpop.f32.mrb[0].mxu0
    %v265 = vadd.f32 0.0, %v264
    %v266 = vpop.f32.mrb[0].mxu0
    %267 = vdwg.mxu0
    %v268 = vld [vmem:[#allocation5] sm:$0xff]
    %v269 = vld [vmem:[#allocation5 + $0x8] sm:$0xff]
    %v270 = vld [vmem:[#allocation5 + $0x10] sm:$0xff]
    %v271 = vld [vmem:[#allocation5 + $0x18] sm:$0xff]
    %v272 = vld [vmem:[#allocation5 + $0x20] sm:$0xff]
    %v273 = vld [vmem:[#allocation5 + $0x28] sm:$0xff]
    %v274 = vld [vmem:[#allocation5 + $0x30] sm:$0xff]
    %v275 = vld [vmem:[#allocation5 + $0x38] sm:$0xff]
    %276 = vmatprep.subr.mxu0 0.0
    %277 = vmatpush1.msra.mxu0 %v190
    %278 = vmatprep.subr.mxu0 0.0
    %279 = vmatpush1.msra.mxu0 %v195
    %280 = vmatprep.subr.mxu0 0.0
    %281 = vmatpush1.msra.mxu0 %v200
    %282 = vmatprep.subr.mxu0 0.0
    %283 = vmatpush1.msra.mxu0 %v205
    %284 = vmatprep.subr.mxu0 0.0
    %285 = vmatpush1.msra.mxu0 %v210
    %286 = vmatprep.subr.mxu0 0.0
    %287 = vmatpush1.msra.mxu0 %v215
    %288 = vmatprep.subr.mxu0 0.0
    %289 = vmatpush1.msra.mxu0 %v220
    %290 = vmatprep.subr.mxu0 0.0
    %291 = vmatpush1.msra.mxu0 %v225
    %292 = vmatprep.subr.mxu0 0.0
    %293 = vmatpush1.msra.mxu0 %v230
    %294 = vmatprep.subr.mxu0 0.0
    %295 = vmatpush1.msra.mxu0 %v235
    %296 = vmatprep.subr.mxu0 0.0
    %297 = vmatpush1.msra.mxu0 %v240
    %298 = vmatprep.subr.mxu0 0.0
    %299 = vmatpush1.msra.mxu0 %v245
    %300 = vmatprep.subr.mxu0 0.0
    %301 = vmatpush1.msra.mxu0 %v250
    %302 = vmatprep.subr.mxu0 0.0
    %303 = vmatpush1.msra.mxu0 %v255
    %304 = vmatprep.subr.mxu0 0.0
    %305 = vmatpush1.msra.mxu0 %v260
    %306 = vmatprep.subr.mxu0 0.0
    %307 = vmatpush1.msra.mxu0 %v265
    %308 = vmatprep.subr.mxu0 0.0
    %309 = vmatpush1.msra.mxu0 0.0
    %310 = vmatprep.subr.mxu0 0.0
    %311 = vmatpush1.msra.mxu0 0.0
    %312 = vmatprep.subr.mxu0 0.0
    %313 = vmatpush1.msra.mxu0 0.0
    %314 = vmatprep.subr.mxu0 0.0
    %315 = vmatpush1.msra.mxu0 0.0
    %316 = vmatprep.subr.mxu0 0.0
    %317 = vmatpush1.msra.mxu0 0.0
    %318 = vmatprep.subr.mxu0 0.0
    %319 = vmatpush1.msra.mxu0 0.0
    %320 = vmatprep.subr.mxu0 0.0
    %321 = vmatpush1.msra.mxu0 0.0
    %322 = vmatprep.subr.mxu0 0.0
    %323 = vmatpush1.msra.mxu0 0.0
    %324 = vmatprep.subr.mxu0 0.0
    %325 = vmatpush1.msra.mxu0 0.0
    %326 = vmatprep.subr.mxu0 0.0
    %327 = vmatpush1.msra.mxu0 0.0
    %328 = vmatprep.subr.mxu0 0.0
    %329 = vmatpush1.msra.mxu0 0.0
    %330 = vmatprep.subr.mxu0 0.0
    %331 = vmatpush1.msra.mxu0 0.0
    %332 = vmatprep.subr.mxu0 0.0
    %333 = vmatpush1.msra.mxu0 0.0
    %334 = vmatprep.subr.mxu0 0.0
    %335 = vmatpush1.msra.mxu0 0.0
    %336 = vmatprep.subr.mxu0 0.0
    %337 = vmatpush1.msra.mxu0 0.0
    %338 = vmatprep.subr.mxu0 0.0
    %339 = vmatpush1.msra.mxu0 0.0
    %340 = vmatprep.mubr.f32.mxu0 0.0
    %341 = vmatmul.mubr.f32.gmra.mrb[0].mxu0 %v268
    %v342 = vpop.f32.mrb[0].mxu0
    %v343 = vadd.f32 0.0, %v342
    %v344 = vpop.f32.mrb[0].mxu0
    %345 = vmatprep.mubr.f32.mxu0 0.0
    %346 = vmatmul.mubr.f32.gmra.mrb[0].mxu0 %v269
    %v347 = vpop.f32.mrb[0].mxu0
    %v348 = vadd.f32 0.0, %v347
    %v349 = vpop.f32.mrb[0].mxu0
    %350 = vmatprep.mubr.f32.mxu0 0.0
    %351 = vmatmul.mubr.f32.gmra.mrb[0].mxu0 %v270
    %v352 = vpop.f32.mrb[0].mxu0
    %v353 = vadd.f32 0.0, %v352
    %v354 = vpop.f32.mrb[0].mxu0
    %355 = vmatprep.mubr.f32.mxu0 0.0
    %356 = vmatmul.mubr.f32.gmra.mrb[0].mxu0 %v271
    %v357 = vpop.f32.mrb[0].mxu0
    %v358 = vadd.f32 0.0, %v357
    %v359 = vpop.f32.mrb[0].mxu0
    %360 = vmatprep.mubr.f32.mxu0 0.0
    %361 = vmatmul.mubr.f32.gmra.mrb[0].mxu0 %v272
    %v362 = vpop.f32.mrb[0].mxu0
    %v363 = vadd.f32 0.0, %v362
    %v364 = vpop.f32.mrb[0].mxu0
    %365 = vmatprep.mubr.f32.mxu0 0.0
    %366 = vmatmul.mubr.f32.gmra.mrb[0].mxu0 %v273
    %v367 = vpop.f32.mrb[0].mxu0
    %v368 = vadd.f32 0.0, %v367
    %v369 = vpop.f32.mrb[0].mxu0
    %370 = vmatprep.mubr.f32.mxu0 0.0
    %371 = vmatmul.mubr.f32.gmra.mrb[0].mxu0 %v274
    %v372 = vpop.f32.mrb[0].mxu0
    %v373 = vadd.f32 0.0, %v372
    %v374 = vpop.f32.mrb[0].mxu0
    %375 = vmatprep.mubr.f32.mxu0 0.0
    %376 = vmatmul.mubr.f32.gmra.mrb[0].mxu0 %v275
    %v377 = vpop.f32.mrb[0].mxu0
    %v378 = vadd.f32 0.0, %v377
    %v379 = vpop.f32.mrb[0].mxu0
    %380 = vdwg.mxu0
    %vm381 = vcmask 64512
    %382 = vst.msk [vmem:[#allocation8] sm:$0xff] %vm381, %v343
    %383 = vst.msk [vmem:[#allocation8 + $0x8] sm:$0xff] %vm381, %v348
    %384 = vst.msk [vmem:[#allocation8 + $0x10] sm:$0xff] %vm381, %v353
    %385 = vst.msk [vmem:[#allocation8 + $0x18] sm:$0xff] %vm381, %v358
    %386 = vst.msk [vmem:[#allocation8 + $0x20] sm:$0xff] %vm381, %v363
    %387 = vst.msk [vmem:[#allocation8 + $0x28] sm:$0xff] %vm381, %v368
    %388 = vst.msk [vmem:[#allocation8 + $0x30] sm:$0xff] %vm381, %v373
    %389 = vst.msk [vmem:[#allocation8 + $0x38] sm:$0xff] %vm381, %v378
    // Predicated region
    $region26: #{downsample.1} parent=1 // pred_check
      _
    $region27: #{downsample.1} parent=1 // pred_check_branch
      %391 = sbr.rel (0) target = $region29
    $region28: #{downsample.1} parent=1 // pred_region
      %s393 = ssub.s32 1024, 1024
      %394 = vsyncadd [#allocation4], %s393
      %s395 = sshll.u32 [#allocation8], 4
      %s396 = int_to_ptr.vmem [resolvable:$true] %s395
      %401 = dma.vmem_to_hbm [thread:$0]  %s396, 1024, %s3, [#allocation4], 128, 128, 8
    $region29: #{downsample.1} parent=1 // pred_fallthru
      _
    // Predicated region
    $region30: #{downsample.1} parent=1 // pred_check
      _
    $region31: #{downsample.1} parent=1 // pred_check_branch
      %403 = sbr.rel (0) target = $region33
    $region32: #{downsample.1} parent=1 // pred_region
      %404 = dma.done [#allocation4], 1024
    $region33: #{downsample.1} parent=1 // pred_fallthru
      _
    %405 = vsyncpa [#allocation3], 1
    %406 = vsyncpa [#allocation6], 1
    %407 = vsyncpa [#allocation4], 1

</llo_original>
